<compile_context>
chip_gen: v7x
topology: tpu7x:2x2x1
jax: 0.10.0
libtpu: 0.0.40
codegen_flags: <defaults>
</compile_context>

<pallas_src>
import jax
import jax.numpy as jnp
from jax.experimental import pallas as pl
from jax.experimental.pallas import tpu as pltpu

PI = 3.141592653589793
PI_PROTATE = 3.1415926235897933  # (sic) exact constant used by pRotatE in the reference


def _split_halves(x):
    d = x.shape[-1] // 2
    return x[..., :d], x[..., d:]


def _round_up(x, m):
    return ((x + m - 1) // m) * m


def _pad_rows(x, rows):
    pad = rows - x.shape[0]
    if pad == 0:
        return x
    widths = ((0, pad),) + ((0, 0),) * (x.ndim - 1)
    return jnp.pad(x, widths)


def _pad_2d(x, rows, cols):
    pr, pc = rows - x.shape[0], cols - x.shape[1]
    if pr == 0 and pc == 0:
        return x
    return jnp.pad(x, ((0, pr), (0, pc)))


# ----------------------------------------------------------------------------
# Kernel.  The wrapper has already hoisted every N-invariant term, so the body
# is:   pos refs (Bt, 1, Dp) f32  [pre-combined positive side]
#       neg refs (Bt, Nt, Dn) bf16/f32  [the only O(B*N*D) stream]
#       out ref  (Bt, Nt) f32
# ----------------------------------------------------------------------------
def _make_kernel(model_name, neg_is_head, gamma, modulus, inv_scale, n_pos, n_neg):
    def kernel(*refs):
        # Upcast immediately after load: bf16 storage, f32 compute (v5e has no
        # bf16 VALU).  No-op when the stream is already f32 (single mode).
        pos = [r[...].astype(jnp.float32) for r in refs[:n_pos]]            # (Bt,1,Dp)
        neg = [r[...].astype(jnp.float32) for r in refs[n_pos:n_pos + n_neg]]  # (Bt,Nt,Dn)
        o_ref = refs[n_pos + n_neg]                                          # (Bt,Nt)

        if model_name == "TransE":
            # pos[0] = (r - t)            [head-batch]   diff = h + (r - t)
            # pos[0] = (h + r)            [else]         diff = (h + r) - t
            diff = (neg[0] + pos[0]) if neg_is_head else (pos[0] - neg[0])
            score = gamma - jnp.sum(jnp.abs(diff), axis=2)

        elif model_name == "DistMult":
            # pos[0] = r*t (head-batch) or h*r (else); product is symmetric.
            score = jnp.sum(neg[0] * pos[0], axis=2)

        elif model_name == "ComplEx":
            # pos = (re_c, im_c) already combined from the two positive factors.
            score = jnp.sum(neg[0] * pos[0] + neg[1] * pos[1], axis=2)

        elif model_name == "RotatE":
            # pos = rotated positive (re_c, im_c); per-negative: sub, sqrt, sum.
            re_s = pos[0] - neg[0]
            im_s = pos[1] - neg[1]
            mag = jnp.sqrt(re_s * re_s + im_s * im_s)
            score = gamma - jnp.sum(mag, axis=2)

        elif model_name == "pRotatE":
            pn = neg[0] * inv_scale                       # negative phase
            s = (pn + pos[0]) if neg_is_head else (pos[0] - pn)
            score = gamma - jnp.sum(jnp.abs(jnp.sin(s)), axis=2) * modulus

        else:
            raise ValueError("model %s not supported" % model_name)

        o_ref[...] = score.astype(o_ref.dtype)

    return kernel


# ----------------------------------------------------------------------------
# Generation-aware tiling.
# ----------------------------------------------------------------------------
def _vmem_capacity_bytes():
    try:
        info = pltpu.get_tpu_info()
        cap = getattr(info, "vmem_capacity_bytes", None)
        if cap:
            return int(cap)
    except Exception:
        pass
    return 64 << 20  # conservative (v7x-sized) fallback


def _generation_params():
    cap = _vmem_capacity_bytes()
    if cap >= (96 << 20):
        # v5e / v6e: 128 MiB physical VMEM -> bigger tiles, raised scoped limit.
        return {"step_budget": 32 << 20, "vmem_limit": 96 << 20, "temp_mult": 3}
    # v7x (64 MiB) or unknown: budget accounts for Mosaic-materialized f32
    # elementwise intermediates; do NOT copy the v5e/v6e raise.
    return {"step_budget": 8 << 20, "vmem_limit": 56 << 20, "temp_mult": 4}


def _choose_tiles(Bp, Np, neg_in_row_bytes, neg_row_elems, gen):
    # Per-(b,n) working bytes: double-buffered input block + estimated live f32
    # temporaries (upcasts + elementwise chain) inside the kernel.
    per_row = 2 * neg_in_row_bytes + gen["temp_mult"] * 4 * neg_row_elems
    Bt = 8 if Bp % 8 == 0 else Bp
    if Np % 128 == 0:
        Nt = 128
        while Np % (Nt * 2) == 0 and Bt * (Nt * 2) * per_row <= gen["step_budget"]:
            Nt *= 2
    else:
        Nt = Np  # only reached for small N (< 128); large ragged N is padded.
    return Bt, Nt


def _score_pallas(model_name, neg_is_head, gamma, modulus, inv_scale,
                  pos_arrays, neg_arrays, Bp, Np):
    n_pos, n_neg = len(pos_arrays), len(neg_arrays)
    neg_in_row_bytes = sum(int(a.shape[-1]) * a.dtype.itemsize for a in neg_arrays)
    neg_row_elems = sum(int(a.shape[-1]) for a in neg_arrays)
    gen = _generation_params()
    Bt, Nt = _choose_tiles(Bp, Np, neg_in_row_bytes, neg_row_elems, gen)
    grid = (Bp // Bt, Np // Nt)

    in_specs = []
    for a in pos_arrays:   # tiny, fetched once per batch tile
        in_specs.append(pl.BlockSpec((Bt, 1, int(a.shape[-1])), lambda b, n: (b, 0, 0)))
    for a in neg_arrays:   # the O(B*N*D) stream
        # TODO(synk): try pipeline_mode=pl.Buffered(3) here on v5e/v6e only.
        in_specs.append(pl.BlockSpec((Bt, Nt, int(a.shape[-1])), lambda b, n: (b, n, 0)))

    bytes_accessed = int(sum(int(a.size) * a.dtype.itemsize for a in pos_arrays)
                         + sum(int(a.size) * a.dtype.itemsize for a in neg_arrays)
                         + Bp * Np * 4)
    flops = int(4 * Bp * Np * neg_row_elems)
    transcendentals = int(Bp * Np * neg_row_elems) if model_name in ("RotatE", "pRotatE") else 0

    kernel = _make_kernel(model_name, neg_is_head, float(gamma), float(modulus),
                          float(inv_scale), n_pos, n_neg)

    return pl.pallas_call(
        kernel,
        out_shape=jax.ShapeDtypeStruct((Bp, Np), jnp.float32),
        grid=grid,
        in_specs=in_specs,
        out_specs=pl.BlockSpec((Bt, Nt), lambda b, n: (b, n)),
        compiler_params=pltpu.CompilerParams(
            dimension_semantics=("parallel", "parallel"),
            vmem_limit_bytes=gen["vmem_limit"],
        ),
        cost_estimate=pl.CostEstimate(flops=flops,
                                      transcendentals=transcendentals,
                                      bytes_accessed=bytes_accessed),
    )(*pos_arrays, *neg_arrays)


# ----------------------------------------------------------------------------
# Pure-JAX reference (mirrors the PyTorch math with full implicit broadcasting).
# ----------------------------------------------------------------------------
def _reference_score(model_name, mode, gamma, embedding_range, modulus,
                     head, relation, tail):
    if model_name == "TransE":
        s = head + (relation - tail) if mode == "head-batch" else head + relation - tail
        return gamma - jnp.sum(jnp.abs(s), axis=2)
    if model_name == "DistMult":
        s = head * (relation * tail) if mode == "head-batch" else head * relation * tail
        return jnp.sum(s, axis=2)
    if model_name == "ComplEx":
        re_h, im_h = _split_halves(head)
        re_r, im_r = _split_halves(relation)
        re_t, im_t = _split_halves(tail)
        if mode == "head-batch":
            re_s = re_r * re_t + im_r * im_t
            im_s = re_r * im_t - im_r * re_t
            s = re_h * re_s + im_h * im_s
        else:
            re_s = re_h * re_r - im_h * im_r
            im_s = re_h * im_r + im_h * re_r
            s = re_s * re_t + im_s * im_t
        return jnp.sum(s, axis=2)
    if model_name == "RotatE":
        re_h, im_h = _split_halves(head)
        re_t, im_t = _split_halves(tail)
        phase = relation / (embedding_range / PI)
        re_r, im_r = jnp.cos(phase), jnp.sin(phase)
        if mode == "head-batch":
            re_s = re_r * re_t + im_r * im_t - re_h
            im_s = re_r * im_t - im_r * re_t - im_h
        else:
            re_s = re_h * re_r - im_h * im_r - re_t
            im_s = re_h * im_r + im_h * re_r - im_t
        mag = jnp.sqrt(re_s * re_s + im_s * im_s)
        return gamma - jnp.sum(mag, axis=2)
    if model_name == "pRotatE":
        ph = head / (embedding_range / PI_PROTATE)
        pr = relation / (embedding_range / PI_PROTATE)
        pt = tail / (embedding_range / PI_PROTATE)
        s = ph + (pr - pt) if mode == "head-batch" else ph + pr - pt
        s = jnp.abs(jnp.sin(s))
        return gamma - jnp.sum(s, axis=2) * modulus
    raise ValueError("model %s not supported" % model_name)


# ----------------------------------------------------------------------------
# KGEModel wrapper (forward pass only; training/eval loops are host-side code)
# ----------------------------------------------------------------------------
class KGEModelPallas:
    def __init__(self, model_name, nentity, nrelation, hidden_dim, gamma,
                 double_entity_embedding=False, double_relation_embedding=False,
                 key=None, negative_dtype=jnp.bfloat16):
        if model_name not in ["TransE", "DistMult", "ComplEx", "RotatE", "pRotatE"]:
            raise ValueError("model %s not supported" % model_name)
        if model_name == "RotatE" and (not double_entity_embedding or double_relation_embedding):
            raise ValueError("RotatE should use --double_entity_embedding")
        if model_name == "ComplEx" and (not double_entity_embedding or not double_relation_embedding):
            raise ValueError("ComplEx should use --double_entity_embedding and --double_relation_embedding")

        self.model_name = model_name
        self.nentity = nentity
        self.nrelation = nrelation
        self.hidden_dim = hidden_dim
        self.epsilon = 2.0
        self.gamma = float(gamma)
        self.embedding_range = (self.gamma + self.epsilon) / hidden_dim
        self.entity_dim = hidden_dim * 2 if double_entity_embedding else hidden_dim
        self.relation_dim = hidden_dim * 2 if double_relation_embedding else hidden_dim

        if key is None:
            key = jax.random.PRNGKey(0)
        k_ent, k_rel = jax.random.split(key)
        # nn.init.uniform_(a=-embedding_range, b=embedding_range), deterministic here.
        self.entity_embedding = jax.random.uniform(
            k_ent, (nentity, self.entity_dim), jnp.float32,
            minval=-self.embedding_range, maxval=self.embedding_range)
        self.relation_embedding = jax.random.uniform(
            k_rel, (nrelation, self.relation_dim), jnp.float32,
            minval=-self.embedding_range, maxval=self.embedding_range)
        # modulus = 0.5 * embedding_range (trainable in torch; re-read each forward here)
        self.modulus = 0.5 * self.embedding_range if model_name == "pRotatE" else 0.0

        # bf16 shadow tables used only for the negative-entity gather (the
        # HBM-bandwidth-bound stream).  Pre-split re/im for ComplEx/RotatE so
        # the gather emits split arrays directly (no extra HBM pass in glue).
        # TODO(synk): on v7x, if the bundle shows RotatE/pRotatE are EUP-bound,
        # pass negative_dtype=jnp.float32 for those two models.
        self.negative_dtype = negative_dtype
        if model_name in ("ComplEx", "RotatE"):
            d2 = self.entity_dim // 2
            self._ent_neg_re = self.entity_embedding[:, :d2].astype(negative_dtype)
            self._ent_neg_im = self.entity_embedding[:, d2:].astype(negative_dtype)
            self._ent_neg = None
        else:
            self._ent_neg = self.entity_embedding.astype(negative_dtype)
            self._ent_neg_re = None
            self._ent_neg_im = None

    # ------------------------------------------------------------------ #
    def forward(self, sample, mode="single"):
        name = self.model_name
        er = self.embedding_range

        # ---- gather (positives from f32 master; negatives from bf16 tables) ---
        if mode == "single":
            triples = sample
            B, N = int(triples.shape[0]), 1
            Bp, Np = _round_up(B, 8), 1
            triples_p = _pad_rows(triples, Bp)           # pad with (0,0,0) -> valid ids
            head = self.entity_embedding[triples_p[:, 0]]
            rel = self.relation_embedding[triples_p[:, 1]]
            tail_f = self.entity_embedding[triples_p[:, 2]]   # N=1 "negative" stream, f32
            neg_is_head = False
            if name in ("ComplEx", "RotatE"):
                re_t, im_t = _split_halves(tail_f)
                neg_arrays = [re_t[:, None, :], im_t[:, None, :]]
            else:
                neg_arrays = [tail_f[:, None, :]]
            tail = tail_f
        elif mode in ("head-batch", "tail-batch"):
            pos_triples, neg_ids = sample
            neg_is_head = (mode == "head-batch")
            B, N = int(neg_ids.shape[0]), int(neg_ids.shape[1])
            Bp = _round_up(B, 8)
            Np = _round_up(N, 128) if N >= 128 else N    # lane-dense tiles for big N
            pos_triples_p = _pad_rows(pos_triples, Bp)
            neg_ids_p = _pad_2d(neg_ids, Bp, Np)         # padded ids -> entity 0 (valid)
            if neg_is_head:
                head = None
                rel = self.relation_embedding[pos_triples_p[:, 1]]
                tail = self.entity_embedding[pos_triples_p[:, 2]]
            else:
                head = self.entity_embedding[pos_triples_p[:, 0]]
                rel = self.relation_embedding[pos_triples_p[:, 1]]
                tail = None
            if name in ("ComplEx", "RotatE"):
                neg_arrays = [self._ent_neg_re[neg_ids_p], self._ent_neg_im[neg_ids_p]]
            else:
                neg_arrays = [self._ent_neg[neg_ids_p]]
        else:
            raise ValueError("mode %s not supported" % mode)

        # ---- N-invariant positive combination (O(B*D) wrapper work) -----------
        if name == "TransE":
            comb = (rel - tail) if neg_is_head else (head + rel)
            pos_arrays = [comb]
        elif name == "DistMult":
            comb = (rel * tail) if neg_is_head else (head * rel)
            pos_arrays = [comb]
        elif name == "pRotatE":
            scale = er / PI_PROTATE
            comb = (rel / scale - tail / scale) if neg_is_head else (head / scale + rel / scale)
            pos_arrays = [comb]
        elif name == "ComplEx":
            if neg_is_head:
                re_r, im_r = _split_halves(rel)
                re_t, im_t = _split_halves(tail)
                re_c = re_r * re_t + im_r * im_t
                im_c = re_r * im_t - im_r * re_t
            else:
                re_h, im_h = _split_halves(head)
                re_r, im_r = _split_halves(rel)
                re_c = re_h * re_r - im_h * im_r
                im_c = re_h * im_r + im_h * re_r
            pos_arrays = [re_c, im_c]
        elif name == "RotatE":
            phase = rel / (er / PI)
            cos_r, sin_r = jnp.cos(phase), jnp.sin(phase)
            if neg_is_head:
                re_t, im_t = _split_halves(tail)
                re_c = cos_r * re_t + sin_r * im_t
                im_c = cos_r * im_t - sin_r * re_t
            else:
                re_h, im_h = _split_halves(head)
                re_c = re_h * cos_r - im_h * sin_r
                im_c = re_h * sin_r + im_h * cos_r
            pos_arrays = [re_c, im_c]
        else:
            raise ValueError("model %s not supported" % name)

        pos_arrays = [p[:, None, :] for p in pos_arrays]     # (Bp, 1, Dp)
        inv_scale = PI_PROTATE / er                           # only used by pRotatE

        out = _score_pallas(name, neg_is_head, self.gamma, self.modulus, inv_scale,
                            pos_arrays, neg_arrays, Bp, Np)
        return out[:B, :N]

    # ------------------------------------------------------------------ #
    # pure-JAX reference (same math as PyTorch, same storage dtypes) for tests
    def _gather_neg_ref(self, ids):
        if self._ent_neg is not None:
            return self._ent_neg[ids].astype(jnp.float32)
        return jnp.concatenate(
            [self._ent_neg_re[ids], self._ent_neg_im[ids]], axis=-1).astype(jnp.float32)

    def forward_ref(self, sample, mode="single"):
        if mode == "single":
            head = self.entity_embedding[sample[:, 0]][:, None, :]
            relation = self.relation_embedding[sample[:, 1]][:, None, :]
            tail = self.entity_embedding[sample[:, 2]][:, None, :]
        elif mode == "head-batch":
            pos_triples, neg_ids = sample
            head = self._gather_neg_ref(neg_ids)
            relation = self.relation_embedding[pos_triples[:, 1]][:, None, :]
            tail = self.entity_embedding[pos_triples[:, 2]][:, None, :]
        elif mode == "tail-batch":
            pos_triples, neg_ids = sample
            head = self.entity_embedding[pos_triples[:, 0]][:, None, :]
            relation = self.relation_embedding[pos_triples[:, 1]][:, None, :]
            tail = self._gather_neg_ref(neg_ids)
        else:
            raise ValueError("mode %s not supported" % mode)
        return _reference_score(self.model_name, mode, self.gamma,
                                self.embedding_range, self.modulus,
                                head, relation, tail)


# TODO(synk): train_step / test_step / svd_emd / normalize_entity_emd are
# host-side training & eval loops (DataLoader, optimizer, numpy SVD) with no
# kernel equivalent; only the forward scoring path is a Pallas kernel.
# TODO(synk): in-kernel negative gather (PrefetchScalarGridSpec + manual DMA of
# entity rows) would remove the gather's HBM intermediate; only worthwhile when
# a row is >= ~1 KiB, so it is not used at these demo sizes.

if __name__ == "__main__":
    key = jax.random.PRNGKey(0)
    nentity, nrelation, hidden_dim, gamma = 64, 16, 32, 12.0
    B = 2

    k_h, k_r, k_t, k_n1, k_n2, k_n3, k_model = jax.random.split(key, 7)
    positive_sample = jnp.stack(
        [jax.random.randint(k_h, (B,), 0, nentity),
         jax.random.randint(k_r, (B,), 0, nrelation),
         jax.random.randint(k_t, (B,), 0, nentity)], axis=1).astype(jnp.int32)
    # small set, a lane-dense multi-tile set (384 = 3*128), and a ragged set
    # (200 -> padded to 256, output sliced) that exercises the padding path.
    neg_small = jax.random.randint(k_n1, (B, 8), 0, nentity).astype(jnp.int32)
    neg_big = jax.random.randint(k_n2, (B, 384), 0, nentity).astype(jnp.int32)
    neg_ragged = jax.random.randint(k_n3, (B, 200), 0, nentity).astype(jnp.int32)

    configs = [
        ("TransE", False, False),
        ("DistMult", False, False),
        ("ComplEx", True, True),
        ("RotatE", True, False),
        ("pRotatE", False, False),
    ]

    for name, de, dr in configs:
        model = KGEModelPallas(name, nentity, nrelation, hidden_dim, gamma,
                               double_entity_embedding=de,
                               double_relation_embedding=dr,
                               key=k_model)
        cases = [("single", positive_sample)]
        for neg in (neg_small, neg_big, neg_ragged):
            cases.append(("head-batch", (positive_sample, neg)))
            cases.append(("tail-batch", (positive_sample, neg)))

        for mode, sample in cases:
            out = jax.block_until_ready(model.forward(sample, mode))
            ref = model.forward_ref(sample, mode)
            expected_shape = (B, 1) if mode == "single" else tuple(sample[1].shape)
            assert out.shape == expected_shape, (name, mode, out.shape)
            assert out.dtype == jnp.float32, (name, mode, out.dtype)
            assert jnp.allclose(out, ref, atol=1e-3, rtol=1e-3), (
                name, mode, float(jnp.max(jnp.abs(out - ref))))

    print("KERNEL_OK")
</pallas_src>

<mosaic_0001>
module attributes {stable_mosaic.version = 11 : i64} {
  func.func @kernel(%arg0: i32, %arg1: i32, %arg2: memref<8x1x32xf32, #tpu.memory_space<vmem>>, %arg3: memref<8x1x32xf32, #tpu.memory_space<vmem>>, %arg4: memref<8x1xf32, #tpu.memory_space<vmem>>) attributes {dimension_semantics = [#tpu.dimension_semantics<parallel>, #tpu.dimension_semantics<parallel>], iteration_bounds = array<i64: 1, 1>, scalar_prefetch = 0 : i64, scratch_operands = 0 : i64, tpu.core_type = #tpu.core_type<tc>, window_params = [{transform_indices = @transform_0, window_bounds = array<i64: 8, 1, 32>}, {transform_indices = @transform_1, window_bounds = array<i64: 8, 1, 32>}, {transform_indices = @transform_2, window_bounds = array<i64: 8, 1>}]} {
    %c0 = arith.constant 0 : index
    %c0_0 = arith.constant 0 : index
    %c0_1 = arith.constant 0 : index
    %0 = vector.load %arg2[%c0, %c0_0, %c0_1] : memref<8x1x32xf32, #tpu.memory_space<vmem>>, vector<8x1x32xf32>
    %c0_2 = arith.constant 0 : index
    %c0_3 = arith.constant 0 : index
    %c0_4 = arith.constant 0 : index
    %1 = vector.load %arg3[%c0_2, %c0_3, %c0_4] : memref<8x1x32xf32, #tpu.memory_space<vmem>>, vector<8x1x32xf32>
    %2 = arith.subf %0, %1 : vector<8x1x32xf32>
    %3 = math.absf %2 : vector<8x1x32xf32>
    %cst = arith.constant dense<0.000000e+00> : vector<8x1xf32>
    %4 = vector.multi_reduction <add>, %3, %cst [2] : vector<8x1x32xf32> to vector<8x1xf32>
    %cst_5 = arith.constant 1.200000e+01 : f32
    %5 = vector.broadcast %cst_5 : f32 to vector<8x1xf32>
    %6 = arith.subf %5, %4 : vector<8x1xf32>
    %c0_6 = arith.constant 0 : index
    %c0_7 = arith.constant 0 : index
    %7 = vector.load %arg4[%c0_6, %c0_7] : memref<8x1xf32, #tpu.memory_space<vmem>>, vector<8x1xf32>
    tpu.vector_store %arg4[%c0_6, %c0_7], %6 {strides = array<i32>} : memref<8x1xf32, #tpu.memory_space<vmem>>, vector<8x1xf32>,
    return
  }
  func.func @transform_0(%arg0: i32, %arg1: i32) -> (i32, i32, i32) {
    %c0_i32 = arith.constant 0 : i32
    %c0_i32_0 = arith.constant 0 : i32
    %c0_i32_1 = arith.constant 0 : i32
    return %arg0, %c0_i32, %c0_i32_0 : i32, i32, i32
  }
  func.func @transform_1(%arg0: i32, %arg1: i32) -> (i32, i32, i32) {
    %c0_i32 = arith.constant 0 : i32
    %c0_i32_0 = arith.constant 0 : i32
    return %arg0, %arg1, %c0_i32 : i32, i32, i32
  }
  func.func @transform_2(%arg0: i32, %arg1: i32) -> (i32, i32) {
    %c0_i32 = arith.constant 0 : i32
    return %arg0, %arg1 : i32, i32
  }
}

</mosaic_0001>

<llo_original>
// kernel: tpu_custom_call.1
$region0: #{tpu_custom_call.1}
  #allocation0 [shape = 'u32[]', space=smem, size = 0x4, offset = 0x4, fixed_abs, tag = 'smem constant byte address 0x4 - core index']
  #allocation1 [shape = 'u32[144,128]{1,0:T(1,128)}', space=vmem, size = 0x12000, scoped, tag = 'internal scratch']
  %s0 = inlined_call_operand.hbm [shape: f32[8,1,32], index: 0, kind: input, shape index: {}]
  %s1 = inlined_call_operand.hbm [shape: f32[8,1,32], index: 1, kind: input, shape index: {}]
  %s2 = inlined_call_operand.vmem [shape: f32[8,1], index: 2, kind: output, shape index: {}]
  %s3 = sld [smem:[#allocation0]]
  $region26: #{tpu_custom_call.1} parent=0
    _
  %s5 = ssub.s32 1, %s3
  %s6 = scalar_select 0, %s5, %s3
  $region1: #{tpu_custom_call.1} parent=0
    #allocation2 [shape = 'u8[4096]{0}', space=vmem, size = 0x1000, scoped, tag = 'input window, operand 0, single buffered']
    #allocation3 [shape = 's32[1]{0}', space=sflag, size = 0x4, scoped, tag = 'scoped memory for tpu_custom_call.1']
    #allocation4 [shape = 'u8[4096]{0}', space=vmem, size = 0x1000, scoped, tag = 'input window, operand 1, single buffered']
    #allocation5 [shape = 's32[1]{0}', space=sflag, size = 0x4, scoped, tag = 'scoped memory for tpu_custom_call.1']
    %7 = vsyncpa [#allocation3], 0
    %8 = vsyncpa [#allocation5], 0
    // Predicated region
    $region2: #{tpu_custom_call.1} parent=1 // pred_check
      _
    $region3: #{tpu_custom_call.1} parent=1 // pred_check_branch
      %10 = sbr.rel (0) target = $region5
    $region4: #{tpu_custom_call.1} parent=1 // pred_region
      %s12 = ssub.s32 128, 128
      %13 = vsyncadd [#allocation3], %s12
      %s14 = sshll.u32 [#allocation2], 4
      %s15 = int_to_ptr.vmem [resolvable:$true] %s14
      %20 = dma.hbm_to_vmem [thread:$0]  %s0, 128, %s15, [#allocation3], 16, 16, 1
    $region5: #{tpu_custom_call.1} parent=1 // pred_fallthru
      _
    // Predicated region
    $region6: #{tpu_custom_call.1} parent=1 // pred_check
      _
    $region7: #{tpu_custom_call.1} parent=1 // pred_check_branch
      %22 = sbr.rel (0) target = $region9
    $region8: #{tpu_custom_call.1} parent=1 // pred_region
      %s24 = ssub.s32 128, 128
      %25 = vsyncadd [#allocation5], %s24
      %s26 = sshll.u32 [#allocation4], 4
      %s27 = int_to_ptr.vmem [resolvable:$true] %s26
      %32 = dma.hbm_to_vmem [thread:$0]  %s1, 128, %s27, [#allocation5], 16, 16, 1
    $region9: #{tpu_custom_call.1} parent=1 // pred_fallthru
      _
    // Predicated region
    $region10: #{tpu_custom_call.1} parent=1 // pred_check
      _
    $region11: #{tpu_custom_call.1} parent=1 // pred_check_branch
      %34 = sbr.rel (0) target = $region13
    $region12: #{tpu_custom_call.1} parent=1 // pred_region
      %35 = dma.done [#allocation3], 128
    $region13: #{tpu_custom_call.1} parent=1 // pred_fallthru
      _
    // Predicated region
    $region14: #{tpu_custom_call.1} parent=1 // pred_check
      _
    $region15: #{tpu_custom_call.1} parent=1 // pred_check_branch
      %37 = sbr.rel (0) target = $region17
    $region16: #{tpu_custom_call.1} parent=1 // pred_region
      %38 = dma.done [#allocation5], 128
    $region17: #{tpu_custom_call.1} parent=1 // pred_fallthru
      _
    %v39 = vld [vmem:[#allocation2] sm:$0x1]
    %v40 = vld [vmem:[#allocation2 + $0x1] sm:$0x1]
    %v41 = vld [vmem:[#allocation2 + $0x2] sm:$0x1]
    %v42 = vld [vmem:[#allocation2 + $0x3] sm:$0x1]
    %v43 = vld [vmem:[#allocation2 + $0x4] sm:$0x1]
    %v44 = vld [vmem:[#allocation2 + $0x5] sm:$0x1]
    %v45 = vld [vmem:[#allocation2 + $0x6] sm:$0x1]
    %v46 = vld [vmem:[#allocation2 + $0x7] sm:$0x1]
    %v47 = vld [vmem:[#allocation4] sm:$0x1]
    %v48 = vld [vmem:[#allocation4 + $0x1] sm:$0x1]
    %v49 = vld [vmem:[#allocation4 + $0x2] sm:$0x1]
    %v50 = vld [vmem:[#allocation4 + $0x3] sm:$0x1]
    %v51 = vld [vmem:[#allocation4 + $0x4] sm:$0x1]
    %v52 = vld [vmem:[#allocation4 + $0x5] sm:$0x1]
    %v53 = vld [vmem:[#allocation4 + $0x6] sm:$0x1]
    %v54 = vld [vmem:[#allocation4 + $0x7] sm:$0x1]
    %v55 = vsub.f32 %v39, %v47
    %v56 = vsub.f32 %v40, %v48
    %v57 = vsub.f32 %v41, %v49
    %v58 = vsub.f32 %v42, %v50
    %v59 = vsub.f32 %v43, %v51
    %v60 = vsub.f32 %v44, %v52
    %v61 = vsub.f32 %v45, %v53
    %v62 = vsub.f32 %v46, %v54
    %v63 = vand.u32 2147483647, %v55
    %v64 = vand.u32 2147483647, %v56
    %v65 = vand.u32 2147483647, %v57
    %v66 = vand.u32 2147483647, %v58
    %v67 = vand.u32 2147483647, %v59
    %v68 = vand.u32 2147483647, %v60
    %v69 = vand.u32 2147483647, %v61
    %v70 = vand.u32 2147483647, %v62
    %vm71 = vcmask 253952
    %v72 = vsel %vm71, %v63, 0.0
    %73 = vadd.xlane.f32.xlu0 %v72
    %v74 = vpop.xlane.xlu0 %73
    %v75 = vsel %vm71, %v64, 0.0
    %76 = vadd.xlane.f32.xlu0 %v75
    %v77 = vpop.xlane.xlu0 %76
    %v78 = vsel %vm71, %v65, 0.0
    %79 = vadd.xlane.f32.xlu0 %v78
    %v80 = vpop.xlane.xlu0 %79
    %v81 = vsel %vm71, %v66, 0.0
    %82 = vadd.xlane.f32.xlu0 %v81
    %v83 = vpop.xlane.xlu0 %82
    %v84 = vsel %vm71, %v67, 0.0
    %85 = vadd.xlane.f32.xlu0 %v84
    %v86 = vpop.xlane.xlu0 %85
    %v87 = vsel %vm71, %v68, 0.0
    %88 = vadd.xlane.f32.xlu0 %v87
    %v89 = vpop.xlane.xlu0 %88
    %v90 = vsel %vm71, %v69, 0.0
    %91 = vadd.xlane.f32.xlu0 %v90
    %v92 = vpop.xlane.xlu0 %91
    %v93 = vsel %vm71, %v70, 0.0
    %94 = vadd.xlane.f32.xlu0 %v93
    %v95 = vpop.xlane.xlu0 %94
    %v96 = vsub.f32 12.0, %v74
    %v97 = vsub.f32 12.0, %v77
    %v98 = vsub.f32 12.0, %v80
    %v99 = vsub.f32 12.0, %v83
    %v100 = vsub.f32 12.0, %v86
    %v101 = vsub.f32 12.0, %v89
    %v102 = vsub.f32 12.0, %v92
    %v103 = vsub.f32 12.0, %v95
    %v112 = vrot.slane %v97, 7
    %vm113 = vcmask 1041409
    %v114 = vsel %vm113, %v112, %v96
    %v115 = vrot.slane %v98, 6
    %vm116 = vcmask 1042434
    %v117 = vsel %vm116, %v115, %v114
    %v118 = vrot.slane %v99, 5
    %vm119 = vcmask 1043459
    %v120 = vsel %vm119, %v118, %v117
    %v121 = vrot.slane %v100, 4
    %vm122 = vcmask 1044484
    %v123 = vsel %vm122, %v121, %v120
    %v124 = vrot.slane %v101, 3
    %vm125 = vcmask 1045509
    %v126 = vsel %vm125, %v124, %v123
    %v127 = vrot.slane %v102, 2
    %vm128 = vcmask 1046534
    %v129 = vsel %vm128, %v127, %v126
    %v130 = vrot.slane %v103, 1
    %vm131 = vcmask 1047559
    %v132 = vsel %vm131, %v130, %v129
    %vm134 = vcmask 7168
    %135 = vst.msk [vmem:[%s2] sm:$0xff] %vm134, %v132
    // Predicated region
    $region18: #{tpu_custom_call.1} parent=1 // pred_check
      _
    $region19: #{tpu_custom_call.1} parent=1 // pred_check_branch
      %137 = sbr.rel (0) target = $region21
    $region20: #{tpu_custom_call.1} parent=1 // pred_region
      _
    $region21: #{tpu_custom_call.1} parent=1 // pred_fallthru
      _
    // Predicated region
    $region22: #{tpu_custom_call.1} parent=1 // pred_check
      _
    $region23: #{tpu_custom_call.1} parent=1 // pred_check_branch
      %139 = sbr.rel (0) target = $region25
    $region24: #{tpu_custom_call.1} parent=1 // pred_region
      _
    $region25: #{tpu_custom_call.1} parent=1 // pred_fallthru
      _
    %140 = vsyncpa [#allocation3], 1
    %141 = vsyncpa [#allocation5], 1

</llo_original>
